<compile_context>
chip_gen: v5e
topology: v5e:2x2
jax: 0.10.0
libtpu: 0.0.40
codegen_flags: <defaults>
</compile_context>

<pallas_src>
import functools

import jax
import jax.numpy as jnp
from jax import lax
from jax.experimental import pallas as pl
from jax.experimental.pallas import tpu as pltpu


def cross_attention_kernel(x_ref, enc_ref, wq_ref, wkv_ref, wp_ref, bp_ref,
                           o_ref, attn_ref, *, bb, t, te, h):
    # x_ref:   (Bb*T,  C)  bf16   flattened query rows for this batch block
    # enc_ref: (Bb*Te, C)  bf16   flattened encoder rows for this batch block
    # wq_ref:  (C, H)      bf16   query weight (softmax scale already folded in)
    # wkv_ref: (C, 2H)     bf16   fused key/value weights
    # wp_ref:  (H, C)      bf16   output projection weight
    # bp_ref:  (1, C)      f32    output projection bias
    # o_ref:   (Bb*T, C)   f32
    # attn_ref:(Bb*T, H)   f32    VMEM scratch holding per-batch contexts

    x = x_ref[...]                      # (Bb*T,  C)
    enc = enc_ref[...]                  # (Bb*Te, C)

    # Projections with batch folded into the M dimension (one fat matmul each).
    q = jnp.dot(x, wq_ref[...], preferred_element_type=jnp.float32)      # (Bb*T,  H)
    kv = jnp.dot(enc, wkv_ref[...], preferred_element_type=jnp.float32)  # (Bb*Te, 2H)

    q_b = q.astype(jnp.bfloat16)
    k_b = kv[:, :h].astype(jnp.bfloat16)
    v_b = kv[:, h:].astype(jnp.bfloat16)

    # Attention is inherently per-batch (scores must not mix batch elements);
    # static unroll over the (small) number of batch elements in this block.
    for bi in range(bb):
        qi = q_b[bi * t:(bi + 1) * t, :]           # (T,  H)
        ki = k_b[bi * te:(bi + 1) * te, :]         # (Te, H)
        vi = v_b[bi * te:(bi + 1) * te, :]         # (Te, H)

        # Scores: contract the last axes directly (no materialized k.T).
        wei = lax.dot_general(qi, ki, (((1,), (1,)), ((), ())),
                              preferred_element_type=jnp.float32)        # (T, Te)

        # Numerically stable softmax over the encoder axis (f32 on VPU/EUP).
        wei = wei - jnp.max(wei, axis=-1, keepdims=True)
        p = jnp.exp(wei)
        p = p * pl.reciprocal(jnp.sum(p, axis=-1, keepdims=True), approx=True)

        attn_ref[bi * t:(bi + 1) * t, :] = jnp.dot(
            p.astype(jnp.bfloat16), vi, preferred_element_type=jnp.float32)

    # Output projection + bias on the whole (Bb*T, H) slab at once.
    ctx = attn_ref[...].astype(jnp.bfloat16)                             # (Bb*T, H)
    o_ref[...] = (jnp.dot(ctx, wp_ref[...], preferred_element_type=jnp.float32)
                  + bp_ref[...])                                         # (Bb*T, C)


def cross_attention(x, enc_out, wq, wk, wv, wp, bp, *, block_b=None):
    B, T, C = x.shape
    B_e, Te, C_e = enc_out.shape
    assert B_e == B and C_e == C
    H = wq.shape[1]

    # Fold the softmax scale into wq; fuse the k/v projection weights.
    wq_s = wq * (H ** -0.5)
    wkv = jnp.concatenate([wk, wv], axis=1)                # (C, 2H)

    # bf16 MXU operands (f32 accumulation happens inside the kernel).
    x2 = x.reshape(B * T, C).astype(jnp.bfloat16)
    e2 = enc_out.reshape(B * Te, C).astype(jnp.bfloat16)
    wq_b = wq_s.astype(jnp.bfloat16)
    wkv_b = wkv.astype(jnp.bfloat16)
    wp_b = wp.astype(jnp.bfloat16)
    bp2 = bp.reshape(1, C).astype(jnp.float32)

    # Fold several batch elements into each grid step (target ~256 query rows
    # per step). For large B this also leaves multiple "parallel" grid steps
    # so megacore chips (v7x) can shard across TensorCores.
    if block_b is None:
        block_b = max(1, min(B, pl.cdiv(256, T)))
    while B % block_b:
        block_b -= 1
    grid = (B // block_b,)

    kernel = functools.partial(cross_attention_kernel,
                               bb=block_b, t=T, te=Te, h=H)

    out2 = pl.pallas_call(
        kernel,
        out_shape=jax.ShapeDtypeStruct((B * T, C), jnp.float32),
        grid_spec=pltpu.PrefetchScalarGridSpec(
            num_scalar_prefetch=0,
            grid=grid,
            in_specs=[
                pl.BlockSpec((block_b * T, C), lambda b: (b, 0)),
                pl.BlockSpec((block_b * Te, C), lambda b: (b, 0)),
                pl.BlockSpec((C, H), lambda b: (0, 0)),
                pl.BlockSpec((C, 2 * H), lambda b: (0, 0)),
                pl.BlockSpec((H, C), lambda b: (0, 0)),
                pl.BlockSpec((1, C), lambda b: (0, 0)),
            ],
            out_specs=pl.BlockSpec((block_b * T, C), lambda b: (b, 0)),
            scratch_shapes=[pltpu.VMEM((block_b * T, H), jnp.float32)],
        ),
        compiler_params=pltpu.CompilerParams(
            dimension_semantics=("parallel",)),
    )(x2, e2, wq_b, wkv_b, wp_b, bp2)

    return out2.reshape(B, T, C)


def cross_attention_ref(x, enc_out, wq, wk, wv, wp, bp):
    q = x @ wq
    k = enc_out @ wk
    v = enc_out @ wv
    wei = (q @ jnp.swapaxes(k, -2, -1)) * (k.shape[-1] ** -0.5)
    wei = jax.nn.softmax(wei, axis=-1)
    out = wei @ v
    return out @ wp + bp


if __name__ == "__main__":
    # Small shapes consistent with the module: n_embd=384, n_head=6 → head_size=64.
    B, T, T_enc = 2, 8, 16
    n_embd, n_head = 384, 6
    head_size = n_embd // n_head  # 64

    key = jax.random.PRNGKey(0)
    kx, ke, k1, k2, k3, k4, k5 = jax.random.split(key, 7)

    x = jax.random.normal(kx, (B, T, n_embd), dtype=jnp.float32)
    enc_out = jax.random.normal(ke, (B, T_enc, n_embd), dtype=jnp.float32)

    # Deterministic parameter init (PyTorch Linear weight is (out, in);
    # here we store the transposed (in, out) form used by the kernel).
    s_in = 1.0 / jnp.sqrt(n_embd)
    s_hd = 1.0 / jnp.sqrt(head_size)
    wq = jax.random.uniform(k1, (n_embd, head_size), jnp.float32, -s_in, s_in)
    wk = jax.random.uniform(k2, (n_embd, head_size), jnp.float32, -s_in, s_in)
    wv = jax.random.uniform(k3, (n_embd, head_size), jnp.float32, -s_in, s_in)
    wp = jax.random.uniform(k4, (head_size, n_embd), jnp.float32, -s_hd, s_hd)
    bp = jax.random.uniform(k5, (n_embd,), jnp.float32, -s_hd, s_hd)

    out = cross_attention(x, enc_out, wq, wk, wv, wp, bp)
    out = jax.block_until_ready(out)

    ref = cross_attention_ref(x, enc_out, wq, wk, wv, wp, bp)
    assert out.shape == (B, T, n_embd)
    # bf16 MXU operands with f32 accumulation → tolerance loosened vs f32 ref.
    assert jnp.allclose(out, ref, atol=3e-2, rtol=3e-2)

    print("KERNEL_OK")
</pallas_src>

<mosaic_0001>
module attributes {stable_mosaic.version = 11 : i64} {
  func.func @cross_attention_kernel(%arg0: i32, %arg1: memref<16x384xbf16, #tpu.memory_space<vmem>>, %arg2: memref<32x384xbf16, #tpu.memory_space<vmem>>, %arg3: memref<384x64xbf16, #tpu.memory_space<vmem>>, %arg4: memref<384x128xbf16, #tpu.memory_space<vmem>>, %arg5: memref<64x384xbf16, #tpu.memory_space<vmem>>, %arg6: memref<1x384xf32, #tpu.memory_space<vmem>>, %arg7: memref<16x384xf32, #tpu.memory_space<vmem>>, %arg8: memref<16x64xf32, #tpu.memory_space<vmem>>) attributes {dimension_semantics = [#tpu.dimension_semantics<parallel>], iteration_bounds = array<i64: 1>, scalar_prefetch = 0 : i64, scratch_operands = 1 : i64, tpu.core_type = #tpu.core_type<tc>, window_params = [{transform_indices = @transform_0, window_bounds = array<i64: 16, 384>}, {transform_indices = @transform_1, window_bounds = array<i64: 32, 384>}, {pipeline_mode = #tpu.pipeline_mode<synchronous>, transform_indices = @transform_2, window_bounds = array<i64: 384, 64>}, {pipeline_mode = #tpu.pipeline_mode<synchronous>, transform_indices = @transform_3, window_bounds = array<i64: 384, 128>}, {pipeline_mode = #tpu.pipeline_mode<synchronous>, transform_indices = @transform_4, window_bounds = array<i64: 64, 384>}, {pipeline_mode = #tpu.pipeline_mode<synchronous>, transform_indices = @transform_5, window_bounds = array<i64: 1, 384>}, {transform_indices = @transform_6, window_bounds = array<i64: 16, 384>}]} {
    %c0 = arith.constant 0 : index
    %c0_0 = arith.constant 0 : index
    %0 = vector.load %arg1[%c0, %c0_0] : memref<16x384xbf16, #tpu.memory_space<vmem>>, vector<16x384xbf16>
    %c0_1 = arith.constant 0 : index
    %c0_2 = arith.constant 0 : index
    %1 = vector.load %arg2[%c0_1, %c0_2] : memref<32x384xbf16, #tpu.memory_space<vmem>>, vector<32x384xbf16>
    %c0_3 = arith.constant 0 : index
    %c0_4 = arith.constant 0 : index
    %2 = vector.load %arg3[%c0_3, %c0_4] : memref<384x64xbf16, #tpu.memory_space<vmem>>, vector<384x64xbf16>
    %cst = arith.constant dense<0.000000e+00> : vector<16x64xf32>
    %3 = tpu.matmul %0, %2, %cst {dimension_numbers = #tpu.dot_dimension_numbers<[1], [0], [0], [1], [0, 0, 1, 1], [], []>} : vector<16x384xbf16>, vector<384x64xbf16>, vector<16x64xf32> -> vector<16x64xf32>
    %c0_5 = arith.constant 0 : index
    %c0_6 = arith.constant 0 : index
    %4 = vector.load %arg4[%c0_5, %c0_6] : memref<384x128xbf16, #tpu.memory_space<vmem>>, vector<384x128xbf16>
    %cst_7 = arith.constant dense<0.000000e+00> : vector<32x128xf32>
    %5 = tpu.matmul %1, %4, %cst_7 {dimension_numbers = #tpu.dot_dimension_numbers<[1], [0], [0], [1], [0, 0, 1, 1], [], []>} : vector<32x384xbf16>, vector<384x128xbf16>, vector<32x128xf32> -> vector<32x128xf32>
    %6 = arith.truncf %3 : vector<16x64xf32> to vector<16x64xbf16>
    %7 = vector.extract_strided_slice %5 {offsets = [0, 0], sizes = [32, 64], strides = [1, 1]} : vector<32x128xf32> to vector<32x64xf32>
    %8 = arith.truncf %7 : vector<32x64xf32> to vector<32x64xbf16>
    %9 = vector.extract_strided_slice %5 {offsets = [0, 64], sizes = [32, 64], strides = [1, 1]} : vector<32x128xf32> to vector<32x64xf32>
    %10 = arith.truncf %9 : vector<32x64xf32> to vector<32x64xbf16>
    %11 = vector.extract_strided_slice %6 {offsets = [0, 0], sizes = [8, 64], strides = [1, 1]} : vector<16x64xbf16> to vector<8x64xbf16>
    %12 = vector.extract_strided_slice %8 {offsets = [0, 0], sizes = [16, 64], strides = [1, 1]} : vector<32x64xbf16> to vector<16x64xbf16>
    %13 = vector.extract_strided_slice %10 {offsets = [0, 0], sizes = [16, 64], strides = [1, 1]} : vector<32x64xbf16> to vector<16x64xbf16>
    %cst_8 = arith.constant dense<0.000000e+00> : vector<8x16xf32>
    %14 = tpu.matmul %11, %12, %cst_8 {dimension_numbers = #tpu.dot_dimension_numbers<[1], [1], [0], [0], [0, 0, 1, 0], [], []>} : vector<8x64xbf16>, vector<16x64xbf16>, vector<8x16xf32> -> vector<8x16xf32>
    %cst_9 = arith.constant dense<0xFF800000> : vector<8xf32>
    %15 = vector.multi_reduction <maximumf>, %14, %cst_9 [1] : vector<8x16xf32> to vector<8xf32>
    %16 = vector.shape_cast %15 : vector<8xf32> to vector<8x1xf32>
    %17 = vector.broadcast %16 : vector<8x1xf32> to vector<8x16xf32>
    %18 = arith.subf %14, %17 : vector<8x16xf32>
    %19 = math.exp %18 : vector<8x16xf32>
    %cst_10 = arith.constant dense<0.000000e+00> : vector<8xf32>
    %20 = vector.multi_reduction <add>, %19, %cst_10 [1] : vector<8x16xf32> to vector<8xf32>
    %21 = vector.shape_cast %20 : vector<8xf32> to vector<8x1xf32>
    %22 = tpu.reciprocal %21 {approx = true} : vector<8x1xf32> -> vector<8x1xf32>
    %23 = vector.broadcast %22 : vector<8x1xf32> to vector<8x16xf32>
    %24 = arith.mulf %19, %23 : vector<8x16xf32>
    %25 = arith.truncf %24 : vector<8x16xf32> to vector<8x16xbf16>
    %cst_11 = arith.constant dense<0.000000e+00> : vector<8x64xf32>
    %26 = tpu.matmul %25, %13, %cst_11 {dimension_numbers = #tpu.dot_dimension_numbers<[1], [0], [0], [1], [0, 0, 1, 1], [], []>} : vector<8x16xbf16>, vector<16x64xbf16>, vector<8x64xf32> -> vector<8x64xf32>
    %c0_12 = arith.constant 0 : index
    %c0_13 = arith.constant 0 : index
    %27 = vector.load %arg8[%c0_12, %c0_13] : memref<16x64xf32, #tpu.memory_space<vmem>>, vector<8x64xf32>
    tpu.vector_store %arg8[%c0_12, %c0_13], %26 {strides = array<i32>} : memref<16x64xf32, #tpu.memory_space<vmem>>, vector<8x64xf32>,
    %28 = vector.extract_strided_slice %6 {offsets = [8, 0], sizes = [8, 64], strides = [1, 1]} : vector<16x64xbf16> to vector<8x64xbf16>
    %29 = vector.extract_strided_slice %8 {offsets = [16, 0], sizes = [16, 64], strides = [1, 1]} : vector<32x64xbf16> to vector<16x64xbf16>
    %30 = vector.extract_strided_slice %10 {offsets = [16, 0], sizes = [16, 64], strides = [1, 1]} : vector<32x64xbf16> to vector<16x64xbf16>
    %cst_14 = arith.constant dense<0.000000e+00> : vector<8x16xf32>
    %31 = tpu.matmul %28, %29, %cst_14 {dimension_numbers = #tpu.dot_dimension_numbers<[1], [1], [0], [0], [0, 0, 1, 0], [], []>} : vector<8x64xbf16>, vector<16x64xbf16>, vector<8x16xf32> -> vector<8x16xf32>
    %cst_15 = arith.constant dense<0xFF800000> : vector<8xf32>
    %32 = vector.multi_reduction <maximumf>, %31, %cst_15 [1] : vector<8x16xf32> to vector<8xf32>
    %33 = vector.shape_cast %32 : vector<8xf32> to vector<8x1xf32>
    %34 = vector.broadcast %33 : vector<8x1xf32> to vector<8x16xf32>
    %35 = arith.subf %31, %34 : vector<8x16xf32>
    %36 = math.exp %35 : vector<8x16xf32>
    %cst_16 = arith.constant dense<0.000000e+00> : vector<8xf32>
    %37 = vector.multi_reduction <add>, %36, %cst_16 [1] : vector<8x16xf32> to vector<8xf32>
    %38 = vector.shape_cast %37 : vector<8xf32> to vector<8x1xf32>
    %39 = tpu.reciprocal %38 {approx = true} : vector<8x1xf32> -> vector<8x1xf32>
    %40 = vector.broadcast %39 : vector<8x1xf32> to vector<8x16xf32>
    %41 = arith.mulf %36, %40 : vector<8x16xf32>
    %42 = arith.truncf %41 : vector<8x16xf32> to vector<8x16xbf16>
    %cst_17 = arith.constant dense<0.000000e+00> : vector<8x64xf32>
    %43 = tpu.matmul %42, %30, %cst_17 {dimension_numbers = #tpu.dot_dimension_numbers<[1], [0], [0], [1], [0, 0, 1, 1], [], []>} : vector<8x16xbf16>, vector<16x64xbf16>, vector<8x64xf32> -> vector<8x64xf32>
    %c8 = arith.constant 8 : index
    %c0_18 = arith.constant 0 : index
    %44 = vector.load %arg8[%c8, %c0_18] : memref<16x64xf32, #tpu.memory_space<vmem>>, vector<8x64xf32>
    tpu.vector_store %arg8[%c8, %c0_18], %43 {strides = array<i32>} : memref<16x64xf32, #tpu.memory_space<vmem>>, vector<8x64xf32>,
    %c0_19 = arith.constant 0 : index
    %c0_20 = arith.constant 0 : index
    %45 = vector.load %arg8[%c0_19, %c0_20] : memref<16x64xf32, #tpu.memory_space<vmem>>, vector<16x64xf32>
    %46 = arith.truncf %45 : vector<16x64xf32> to vector<16x64xbf16>
    %c0_21 = arith.constant 0 : index
    %c0_22 = arith.constant 0 : index
    %47 = vector.load %arg5[%c0_21, %c0_22] : memref<64x384xbf16, #tpu.memory_space<vmem>>, vector<64x384xbf16>
    %cst_23 = arith.constant dense<0.000000e+00> : vector<16x384xf32>
    %48 = tpu.matmul %46, %47, %cst_23 {dimension_numbers = #tpu.dot_dimension_numbers<[1], [0], [0], [1], [0, 0, 1, 1], [], []>} : vector<16x64xbf16>, vector<64x384xbf16>, vector<16x384xf32> -> vector<16x384xf32>
    %c0_24 = arith.constant 0 : index
    %c0_25 = arith.constant 0 : index
    %49 = vector.load %arg6[%c0_24, %c0_25] : memref<1x384xf32, #tpu.memory_space<vmem>>, vector<1x384xf32>
    %50 = vector.broadcast %49 : vector<1x384xf32> to vector<16x384xf32>
    %51 = arith.addf %48, %50 : vector<16x384xf32>
    %c0_26 = arith.constant 0 : index
    %c0_27 = arith.constant 0 : index
    %52 = vector.load %arg7[%c0_26, %c0_27] : memref<16x384xf32, #tpu.memory_space<vmem>>, vector<16x384xf32>
    tpu.vector_store %arg7[%c0_26, %c0_27], %51 {strides = array<i32>} : memref<16x384xf32, #tpu.memory_space<vmem>>, vector<16x384xf32>,
    return
  }
  func.func @transform_0(%arg0: i32) -> (i32, i32) {
    %c0_i32 = arith.constant 0 : i32
    %c0_i32_0 = arith.constant 0 : i32
    return %arg0, %c0_i32 : i32, i32
  }
  func.func @transform_1(%arg0: i32) -> (i32, i32) {
    %c0_i32 = arith.constant 0 : i32
    %c0_i32_0 = arith.constant 0 : i32
    return %arg0, %c0_i32 : i32, i32
  }
  func.func @transform_2(%arg0: i32) -> (i32, i32) {
    %c0_i32 = arith.constant 0 : i32
    %c0_i32_0 = arith.constant 0 : i32
    %c0_i32_1 = arith.constant 0 : i32
    return %c0_i32, %c0_i32_0 : i32, i32
  }
  func.func @transform_3(%arg0: i32) -> (i32, i32) {
    %c0_i32 = arith.constant 0 : i32
    %c0_i32_0 = arith.constant 0 : i32
    %c0_i32_1 = arith.constant 0 : i32
    return %c0_i32, %c0_i32_0 : i32, i32
  }
  func.func @transform_4(%arg0: i32) -> (i32, i32) {
    %c0_i32 = arith.constant 0 : i32
    %c0_i32_0 = arith.constant 0 : i32
    %c0_i32_1 = arith.constant 0 : i32
    return %c0_i32, %c0_i32_0 : i32, i32
  }
  func.func @transform_5(%arg0: i32) -> (i32, i32) {
    %c0_i32 = arith.constant 0 : i32
    %c0_i32_0 = arith.constant 0 : i32
    %c0_i32_1 = arith.constant 0 : i32
    return %c0_i32, %c0_i32_0 : i32, i32
  }
  func.func @transform_6(%arg0: i32) -> (i32, i32) {
    %c0_i32 = arith.constant 0 : i32
    %c0_i32_0 = arith.constant 0 : i32
    return %arg0, %c0_i32 : i32, i32
  }
}

</mosaic_0001>

<llo_original>
// kernel: tpu_custom_call.1
$region0: #{tpu_custom_call.1}
  #allocation0 [shape = 'u32[]', space=smem, size = 0x4, offset = 0x4, fixed_abs, tag = 'smem constant byte address 0x4 - core index']
  #allocation1 [shape = 'u32[72,128]{1,0:T(1,128)}', space=vmem, size = 0x9000, scoped, tag = 'internal scratch']
  #allocation2 [shape = 'f32[16,64]{1,0:T(8,128)}', space=vmem, size = 0x2000, scoped, tag = 'scratch operand']
  %s0 = inlined_call_operand.hbm [shape: bf16[16,384], index: 0, kind: input, shape index: {}]
  %s1 = inlined_call_operand.hbm [shape: bf16[32,384], index: 1, kind: input, shape index: {}]
  %s2 = inlined_call_operand.vmem [shape: bf16[384,64], index: 2, kind: input, shape index: {}]
  %s3 = inlined_call_operand.vmem [shape: bf16[384,128], index: 3, kind: input, shape index: {}]
  %s4 = inlined_call_operand.vmem [shape: bf16[64,384], index: 4, kind: input, shape index: {}]
  %s5 = inlined_call_operand.vmem [shape: f32[1,384], index: 5, kind: input, shape index: {}]
  %s6 = inlined_call_operand.hbm [shape: f32[16,384], index: 6, kind: output, shape index: {}]
  %s7 = sld [smem:[#allocation0]]
  $region42: #{tpu_custom_call.1} parent=0
    _
  %s9 = ssub.s32 1, %s7
  %s10 = scalar_select 0, %s9, %s7
  $region1: #{tpu_custom_call.1} parent=0
    #allocation3 [shape = 'u8[12288]{0}', space=vmem, size = 0x3000, scoped, tag = 'input window, operand 0, single buffered']
    #allocation4 [shape = 's32[1]{0}', space=sflag, size = 0x4, scoped, tag = 'scoped memory for tpu_custom_call.1']
    #allocation5 [shape = 's32[1]{0}', space=sflag, size = 0x4, scoped, tag = 'scoped memory for tpu_custom_call.1']
    #allocation6 [shape = 'u8[24576]{0}', space=vmem, size = 0x6000, scoped, tag = 'input window, operand 1, single buffered']
    #allocation7 [shape = 's32[1]{0}', space=sflag, size = 0x4, scoped, tag = 'scoped memory for tpu_custom_call.1']
    #allocation8 [shape = 'u8[24576]{0}', space=vmem, size = 0x6000, scoped, tag = 'output window, operand 0, single buffered']
    %11 = vsyncpa [#allocation4], 0
    %12 = vsyncpa [#allocation7], 0
    %13 = vsyncpa [#allocation5], 0
    // Predicated region
    $region2: #{tpu_custom_call.1} parent=1 // pred_check
      _
    $region3: #{tpu_custom_call.1} parent=1 // pred_check_branch
      %15 = sbr.rel (0) target = $region5
    $region4: #{tpu_custom_call.1} parent=1 // pred_region
      %17 = vsyncadd [#allocation4], 0
      %s18 = sshll.u32 %s0, 4
      %s19 = int_to_ptr.hbm [resolvable:$true] %s18
      %s20 = sshll.u32 [#allocation3], 4
      %s21 = int_to_ptr.vmem [resolvable:$true] %s20
      %26 = dma.hbm_to_vmem [thread:$0]  %s19, 384, %s21, [#allocation4], 192, 192, 12
    $region5: #{tpu_custom_call.1} parent=1 // pred_fallthru
      _
    // Predicated region
    $region6: #{tpu_custom_call.1} parent=1 // pred_check
      _
    $region7: #{tpu_custom_call.1} parent=1 // pred_check_branch
      %28 = sbr.rel (0) target = $region9
    $region8: #{tpu_custom_call.1} parent=1 // pred_region
      %30 = vsyncadd [#allocation7], 0
      %s31 = sshll.u32 %s1, 4
      %s32 = int_to_ptr.hbm [resolvable:$true] %s31
      %s33 = sshll.u32 [#allocation6], 4
      %s34 = int_to_ptr.vmem [resolvable:$true] %s33
      %39 = dma.hbm_to_vmem [thread:$0]  %s32, 768, %s34, [#allocation7], 192, 192, 12
    $region9: #{tpu_custom_call.1} parent=1 // pred_fallthru
      _
    // Predicated region
    $region10: #{tpu_custom_call.1} parent=1 // pred_check
      _
    $region11: #{tpu_custom_call.1} parent=1 // pred_check_branch
      %41 = sbr.rel (0) target = $region13
    $region12: #{tpu_custom_call.1} parent=1 // pred_region
      _
    $region13: #{tpu_custom_call.1} parent=1 // pred_fallthru
      _
    // Predicated region
    $region14: #{tpu_custom_call.1} parent=1 // pred_check
      _
    $region15: #{tpu_custom_call.1} parent=1 // pred_check_branch
      %43 = sbr.rel (0) target = $region17
    $region16: #{tpu_custom_call.1} parent=1 // pred_region
      _
    $region17: #{tpu_custom_call.1} parent=1 // pred_fallthru
      _
    // Predicated region
    $region18: #{tpu_custom_call.1} parent=1 // pred_check
      _
    $region19: #{tpu_custom_call.1} parent=1 // pred_check_branch
      %45 = sbr.rel (0) target = $region21
    $region20: #{tpu_custom_call.1} parent=1 // pred_region
      _
    $region21: #{tpu_custom_call.1} parent=1 // pred_fallthru
      _
    // Predicated region
    $region22: #{tpu_custom_call.1} parent=1 // pred_check
      _
    $region23: #{tpu_custom_call.1} parent=1 // pred_check_branch
      %47 = sbr.rel (0) target = $region25
    $region24: #{tpu_custom_call.1} parent=1 // pred_region
      _
    $region25: #{tpu_custom_call.1} parent=1 // pred_fallthru
      _
    // Predicated region
    $region26: #{tpu_custom_call.1} parent=1 // pred_check
      _
    $region27: #{tpu_custom_call.1} parent=1 // pred_check_branch
      %49 = sbr.rel (0) target = $region29
    $region28: #{tpu_custom_call.1} parent=1 // pred_region
      %51 = dma.done [#allocation4], 384
    $region29: #{tpu_custom_call.1} parent=1 // pred_fallthru
      _
    // Predicated region
    $region30: #{tpu_custom_call.1} parent=1 // pred_check
      _
    $region31: #{tpu_custom_call.1} parent=1 // pred_check_branch
      %53 = sbr.rel (0) target = $region33
    $region32: #{tpu_custom_call.1} parent=1 // pred_region
      %55 = dma.done [#allocation7], 768
    $region33: #{tpu_custom_call.1} parent=1 // pred_fallthru
      _
    %v57 = vld [vmem:[#allocation3] sm:$0xff]
    %v58 = vld [vmem:[#allocation3 + $0x8] sm:$0xf]
    %v59 = vld [vmem:[#allocation3 + $0xc] sm:$0xff]
    %v60 = vld [vmem:[#allocation3 + $0x14] sm:$0xf]
    %v61 = vld [vmem:[#allocation6] sm:$0xff]
    %v62 = vld [vmem:[#allocation6 + $0x8] sm:$0xf]
    %v63 = vld [vmem:[#allocation6 + $0xc] sm:$0xff]
    %v64 = vld [vmem:[#allocation6 + $0x14] sm:$0xf]
    %v65 = vld [vmem:[#allocation6 + $0x18] sm:$0xff]
    %v66 = vld [vmem:[#allocation6 + $0x20] sm:$0xf]
    %v67 = vld [vmem:[#allocation6 + $0x24] sm:$0xff]
    %v68 = vld [vmem:[#allocation6 + $0x2c] sm:$0xf]
    %v69 = vld [vmem:[%s2] sm:$0xf]
    %v70 = vld [vmem:[%s2 + $0x4] sm:$0xf]
    %v71 = vld [vmem:[%s2 + $0x8] sm:$0xf]
    %v72 = vld [vmem:[%s2 + $0xc] sm:$0xf]
    %v73 = vld [vmem:[%s2 + $0x10] sm:$0xf]
    %v74 = vld [vmem:[%s2 + $0x14] sm:$0xf]
    %v75 = vld [vmem:[%s2 + $0x18] sm:$0xf]
    %v76 = vld [vmem:[%s2 + $0x1c] sm:$0xf]
    %v77 = vld [vmem:[%s2 + $0x20] sm:$0xf]
    %v78 = vld [vmem:[%s2 + $0x24] sm:$0xf]
    %v79 = vld [vmem:[%s2 + $0x28] sm:$0xf]
    %v80 = vld [vmem:[%s2 + $0x2c] sm:$0xf]
    %v81 = vld [vmem:[%s2 + $0x30] sm:$0xf]
    %v82 = vld [vmem:[%s2 + $0x34] sm:$0xf]
    %v83 = vld [vmem:[%s2 + $0x38] sm:$0xf]
    %v84 = vld [vmem:[%s2 + $0x3c] sm:$0xf]
    %v85 = vld [vmem:[%s2 + $0x40] sm:$0xf]
    %v86 = vld [vmem:[%s2 + $0x44] sm:$0xf]
    %v87 = vld [vmem:[%s2 + $0x48] sm:$0xf]
    %v88 = vld [vmem:[%s2 + $0x4c] sm:$0xf]
    %v89 = vld [vmem:[%s2 + $0x50] sm:$0xf]
    %v90 = vld [vmem:[%s2 + $0x54] sm:$0xf]
    %v91 = vld [vmem:[%s2 + $0x58] sm:$0xf]
    %v92 = vld [vmem:[%s2 + $0x5c] sm:$0xf]
    %v93 = vld [vmem:[%s2 + $0x60] sm:$0xf]
    %v94 = vld [vmem:[%s2 + $0x64] sm:$0xf]
    %v95 = vld [vmem:[%s2 + $0x68] sm:$0xf]
    %v96 = vld [vmem:[%s2 + $0x6c] sm:$0xf]
    %v97 = vld [vmem:[%s2 + $0x70] sm:$0xf]
    %v98 = vld [vmem:[%s2 + $0x74] sm:$0xf]
    %v99 = vld [vmem:[%s2 + $0x78] sm:$0xf]
    %v100 = vld [vmem:[%s2 + $0x7c] sm:$0xf]
    %v101 = vld [vmem:[%s2 + $0x80] sm:$0xf]
    %v102 = vld [vmem:[%s2 + $0x84] sm:$0xf]
    %v103 = vld [vmem:[%s2 + $0x88] sm:$0xf]
    %v104 = vld [vmem:[%s2 + $0x8c] sm:$0xf]
    %v105 = vld [vmem:[%s2 + $0x90] sm:$0xf]
    %v106 = vld [vmem:[%s2 + $0x94] sm:$0xf]
    %v107 = vld [vmem:[%s2 + $0x98] sm:$0xf]
    %v108 = vld [vmem:[%s2 + $0x9c] sm:$0xf]
    %v109 = vld [vmem:[%s2 + $0xa0] sm:$0xf]
    %v110 = vld [vmem:[%s2 + $0xa4] sm:$0xf]
    %v111 = vld [vmem:[%s2 + $0xa8] sm:$0xf]
    %v112 = vld [vmem:[%s2 + $0xac] sm:$0xf]
    %v113 = vld [vmem:[%s2 + $0xb0] sm:$0xf]
    %v114 = vld [vmem:[%s2 + $0xb4] sm:$0xf]
    %v115 = vld [vmem:[%s2 + $0xb8] sm:$0xf]
    %v116 = vld [vmem:[%s2 + $0xbc] sm:$0xf]
    %v121 = vunpack.c.l.b16 %v57
    %v122 = vunpack.c.h.b16 %v57
    %v123 = vunpack.c.l.b16 %v58
    %v124 = vunpack.c.l.b16 %v59
    %v125 = vunpack.c.h.b16 %v59
    %v126 = vunpack.c.l.b16 %v60
    %v127 = vpack.c.b16 %v124, %v121
    %v128 = vpack.c.b16 %v125, %v122
    %v129 = vpack.c.b16 %v126, %v123
    %v181 = vunpack.c.l.b16 %v69
    %v182 = vunpack.c.l.b16 %v70
    %v183 = vunpack.c.l.b16 %v71
    %v184 = vunpack.c.l.b16 %v72
    %v185 = vunpack.c.l.b16 %v73
    %v186 = vunpack.c.l.b16 %v74
    %v187 = vunpack.c.l.b16 %v75
    %v188 = vunpack.c.l.b16 %v76
    %v189 = vunpack.c.l.b16 %v77
    %v190 = vunpack.c.l.b16 %v78
    %v191 = vunpack.c.l.b16 %v79
    %v192 = vunpack.c.l.b16 %v80
    %v193 = vunpack.c.l.b16 %v81
    %v194 = vunpack.c.l.b16 %v82
    %v195 = vunpack.c.l.b16 %v83
    %v196 = vunpack.c.l.b16 %v84
    %v197 = vunpack.c.l.b16 %v85
    %v198 = vunpack.c.l.b16 %v86
    %v199 = vunpack.c.l.b16 %v87
    %v200 = vunpack.c.l.b16 %v88
    %v201 = vunpack.c.l.b16 %v89
    %v202 = vunpack.c.l.b16 %v90
    %v203 = vunpack.c.l.b16 %v91
    %v204 = vunpack.c.l.b16 %v92
    %v205 = vunpack.c.l.b16 %v93
    %v206 = vunpack.c.l.b16 %v94
    %v207 = vunpack.c.l.b16 %v95
    %v208 = vunpack.c.l.b16 %v96
    %v209 = vunpack.c.l.b16 %v97
    %v210 = vunpack.c.l.b16 %v98
    %v211 = vunpack.c.l.b16 %v99
    %v212 = vunpack.c.l.b16 %v100
    %v213 = vunpack.c.l.b16 %v101
    %v214 = vunpack.c.l.b16 %v102
    %v215 = vunpack.c.l.b16 %v103
    %v216 = vunpack.c.l.b16 %v104
    %v217 = vunpack.c.l.b16 %v105
    %v218 = vunpack.c.l.b16 %v106
    %v219 = vunpack.c.l.b16 %v107
    %v220 = vunpack.c.l.b16 %v108
    %v221 = vunpack.c.l.b16 %v109
    %v222 = vunpack.c.l.b16 %v110
    %v223 = vunpack.c.l.b16 %v111
    %v224 = vunpack.c.l.b16 %v112
    %v225 = vunpack.c.l.b16 %v113
    %v226 = vunpack.c.l.b16 %v114
    %v227 = vunpack.c.l.b16 %v115
    %v228 = vunpack.c.l.b16 %v116
    %v229 = vpack.c.b16 %v182, %v181
    %v230 = vpack.c.b16 %v184, %v183
    %v231 = vpack.c.b16 %v186, %v185
    %v232 = vpack.c.b16 %v188, %v187
    %v233 = vpack.c.b16 %v190, %v189
    %v234 = vpack.c.b16 %v192, %v191
    %v235 = vpack.c.b16 %v194, %v193
    %v236 = vpack.c.b16 %v196, %v195
    %v237 = vpack.c.b16 %v198, %v197
    %v238 = vpack.c.b16 %v200, %v199
    %v239 = vpack.c.b16 %v202, %v201
    %v240 = vpack.c.b16 %v204, %v203
    %v241 = vpack.c.b16 %v206, %v205
    %v242 = vpack.c.b16 %v208, %v207
    %v243 = vpack.c.b16 %v210, %v209
    %v244 = vpack.c.b16 %v212, %v211
    %v245 = vpack.c.b16 %v214, %v213
    %v246 = vpack.c.b16 %v216, %v215
    %v247 = vpack.c.b16 %v218, %v217
    %v248 = vpack.c.b16 %v220, %v219
    %v249 = vpack.c.b16 %v222, %v221
    %v250 = vpack.c.b16 %v224, %v223
    %v251 = vpack.c.b16 %v226, %v225
    %v252 = vpack.c.b16 %v228, %v227
    %277 = vmatpush.bf16.msra.mxu0 %v236
    %278 = vmatpush.bf16.msra.mxu0 %v235
    %279 = vmatpush.bf16.msra.mxu0 %v234
    %280 = vmatpush.bf16.msra.mxu0 %v233
    %281 = vmatpush.bf16.msra.mxu0 %v232
    %282 = vmatpush.bf16.msra.mxu0 %v231
    %283 = vmatpush.bf16.msra.mxu0 %v230
    %284 = vmatpush.bf16.msra.mxu0 %v229
    %285 = vmatmul.bf16.gmra.mxu0 %v127
    %v286 = vpop.f32.mrf.mxu0
    %v287 = vadd.f32 0.0, %v286
    %v288 = vpop.f32.mrf.mxu0
    %v289 = vadd.f32 0.0, %v288
    %290 = vdwg.mxu0
    %291 = vmatpush.bf16.msra.mxu0 %v244
    %292 = vmatpush.bf16.msra.mxu0 %v243
    %293 = vmatpush.bf16.msra.mxu0 %v242
    %294 = vmatpush.bf16.msra.mxu0 %v241
    %295 = vmatpush.bf16.msra.mxu0 %v240
    %296 = vmatpush.bf16.msra.mxu0 %v239
    %297 = vmatpush.bf16.msra.mxu0 %v238
    %298 = vmatpush.bf16.msra.mxu0 %v237
    %299 = vmatmul.bf16.gmra.mxu0 %v128
    %v300 = vpop.f32.mrf.mxu0
    %v301 = vadd.f32 %v287, %v300
    %v302 = vpop.f32.mrf.mxu0
    %v303 = vadd.f32 %v289, %v302
    %304 = vdwg.mxu0
    %305 = vmatpush.bf16.msra.mxu0 %v252
    %306 = vmatpush.bf16.msra.mxu0 %v251
    %307 = vmatpush.bf16.msra.mxu0 %v250
    %308 = vmatpush.bf16.msra.mxu0 %v249
    %309 = vmatpush.bf16.msra.mxu0 %v248
    %310 = vmatpush.bf16.msra.mxu0 %v247
    %311 = vmatpush.bf16.msra.mxu0 %v246
    %312 = vmatpush.bf16.msra.mxu0 %v245
    %313 = vmatmul.bf16.gmra.mxu0 %v129
    %v314 = vpop.f32.mrf.mxu0
    %v315 = vadd.f32 %v301, %v314
    %v316 = vpop.f32.mrf.mxu0
    %v317 = vadd.f32 %v303, %v316
    %318 = vdwg.mxu0
    %v319 = vld [vmem:[%s3] sm:$0xf]
    %v320 = vld [vmem:[%s3 + $0x4] sm:$0xf]
    %v321 = vld [vmem:[%s3 + $0x8] sm:$0xf]
    %v322 = vld [vmem:[%s3 + $0xc] sm:$0xf]
    %v323 = vld [vmem:[%s3 + $0x10] sm:$0xf]
    %v324 = vld [vmem:[%s3 + $0x14] sm:$0xf]
    %v325 = vld [vmem:[%s3 + $0x18] sm:$0xf]
    %v326 = vld [vmem:[%s3 + $0x1c] sm:$0xf]
    %v327 = vld [vmem:[%s3 + $0x20] sm:$0xf]
    %v328 = vld [vmem:[%s3 + $0x24] sm:$0xf]
    %v329 = vld [vmem:[%s3 + $0x28] sm:$0xf]
    %v330 = vld [vmem:[%s3 + $0x2c] sm:$0xf]
    %v331 = vld [vmem:[%s3 + $0x30] sm:$0xf]
    %v332 = vld [vmem:[%s3 + $0x34] sm:$0xf]
    %v333 = vld [vmem:[%s3 + $0x38] sm:$0xf]
    %v334 = vld [vmem:[%s3 + $0x3c] sm:$0xf]
    %v335 = vld [vmem:[%s3 + $0x40] sm:$0xf]
    %v336 = vld [vmem:[%s3 + $0x44] sm:$0xf]
    %v337 = vld [vmem:[%s3 + $0x48] sm:$0xf]
    %v338 = vld [vmem:[%s3 + $0x4c] sm:$0xf]
    %v339 = vld [vmem:[%s3 + $0x50] sm:$0xf]
    %v340 = vld [vmem:[%s3 + $0x54] sm:$0xf]
    %v341 = vld [vmem:[%s3 + $0x58] sm:$0xf]
    %v342 = vld [vmem:[%s3 + $0x5c] sm:$0xf]
    %v343 = vld [vmem:[%s3 + $0x60] sm:$0xf]
    %v344 = vld [vmem:[%s3 + $0x64] sm:$0xf]
    %v345 = vld [vmem:[%s3 + $0x68] sm:$0xf]
    %v346 = vld [vmem:[%s3 + $0x6c] sm:$0xf]
    %v347 = vld [vmem:[%s3 + $0x70] sm:$0xf]
    %v348 = vld [vmem:[%s3 + $0x74] sm:$0xf]
    %v349 = vld [vmem:[%s3 + $0x78] sm:$0xf]
    %v350 = vld [vmem:[%s3 + $0x7c] sm:$0xf]
    %v351 = vld [vmem:[%s3 + $0x80] sm:$0xf]
    %v352 = vld [vmem:[%s3 + $0x84] sm:$0xf]
    %v353 = vld [vmem:[%s3 + $0x88] sm:$0xf]
    %v354 = vld [vmem:[%s3 + $0x8c] sm:$0xf]
    %v355 = vld [vmem:[%s3 + $0x90] sm:$0xf]
    %v356 = vld [vmem:[%s3 + $0x94] sm:$0xf]
    %v357 = vld [vmem:[%s3 + $0x98] sm:$0xf]
    %v358 = vld [vmem:[%s3 + $0x9c] sm:$0xf]
    %v359 = vld [vmem:[%s3 + $0xa0] sm:$0xf]
    %v360 = vld [vmem:[%s3 + $0xa4] sm:$0xf]
    %v361 = vld [vmem:[%s3 + $0xa8] sm:$0xf]
    %v362 = vld [vmem:[%s3 + $0xac] sm:$0xf]
    %v363 = vld [vmem:[%s3 + $0xb0] sm:$0xf]
    %v364 = vld [vmem:[%s3 + $0xb4] sm:$0xf]
    %v365 = vld [vmem:[%s3 + $0xb8] sm:$0xf]
    %v366 = vld [vmem:[%s3 + $0xbc] sm:$0xf]
    %v375 = vunpack.c.l.b16 %v61
    %v376 = vunpack.c.h.b16 %v61
    %v377 = vunpack.c.l.b16 %v62
    %v378 = vunpack.c.l.b16 %v63
    %v379 = vunpack.c.h.b16 %v63
    %v380 = vunpack.c.l.b16 %v64
    %v381 = vunpack.c.l.b16 %v65
    %v382 = vunpack.c.h.b16 %v65
    %v383 = vunpack.c.l.b16 %v66
    %v384 = vunpack.c.l.b16 %v67
    %v385 = vunpack.c.h.b16 %v67
    %v386 = vunpack.c.l.b16 %v68
    %v387 = vpack.c.b16 %v378, %v375
    %v388 = vpack.c.b16 %v379, %v376
    %v389 = vpack.c.b16 %v380, %v377
    %v390 = vpack.c.b16 %v384, %v381
    %v391 = vpack.c.b16 %v385, %v382
    %v392 = vpack.c.b16 %v386, %v383
    %v447 = vunpack.c.l.b16 %v319
    %v448 = vunpack.c.l.b16 %v320
    %v449 = vunpack.c.l.b16 %v321
    %v450 = vunpack.c.l.b16 %v322
    %v451 = vunpack.c.l.b16 %v323
    %v452 = vunpack.c.l.b16 %v324
    %v453 = vunpack.c.l.b16 %v325
    %v454 = vunpack.c.l.b16 %v326
    %v455 = vunpack.c.l.b16 %v327
    %v456 = vunpack.c.l.b16 %v328
    %v457 = vunpack.c.l.b16 %v329
    %v458 = vunpack.c.l.b16 %v330
    %v459 = vunpack.c.l.b16 %v331
    %v460 = vunpack.c.l.b16 %v332
    %v461 = vunpack.c.l.b16 %v333
    %v462 = vunpack.c.l.b16 %v334
    %v463 = vunpack.c.l.b16 %v335
    %v464 = vunpack.c.l.b16 %v336
    %v465 = vunpack.c.l.b16 %v337
    %v466 = vunpack.c.l.b16 %v338
    %v467 = vunpack.c.l.b16 %v339
    %v468 = vunpack.c.l.b16 %v340
    %v469 = vunpack.c.l.b16 %v341
    %v470 = vunpack.c.l.b16 %v342
    %v471 = vunpack.c.l.b16 %v343
    %v472 = vunpack.c.l.b16 %v344
    %v473 = vunpack.c.l.b16 %v345
    %v474 = vunpack.c.l.b16 %v346
    %v475 = vunpack.c.l.b16 %v347
    %v476 = vunpack.c.l.b16 %v348
    %v477 = vunpack.c.l.b16 %v349
    %v478 = vunpack.c.l.b16 %v350
    %v479 = vunpack.c.l.b16 %v351
    %v480 = vunpack.c.l.b16 %v352
    %v481 = vunpack.c.l.b16 %v353
    %v482 = vunpack.c.l.b16 %v354
    %v483 = vunpack.c.l.b16 %v355
    %v484 = vunpack.c.l.b16 %v356
    %v485 = vunpack.c.l.b16 %v357
    %v486 = vunpack.c.l.b16 %v358
    %v487 = vunpack.c.l.b16 %v359
    %v488 = vunpack.c.l.b16 %v360
    %v489 = vunpack.c.l.b16 %v361
    %v490 = vunpack.c.l.b16 %v362
    %v491 = vunpack.c.l.b16 %v363
    %v492 = vunpack.c.l.b16 %v364
    %v493 = vunpack.c.l.b16 %v365
    %v494 = vunpack.c.l.b16 %v366
    %v495 = vpack.c.b16 %v448, %v447
    %v496 = vpack.c.b16 %v450, %v449
    %v497 = vpack.c.b16 %v452, %v451
    %v498 = vpack.c.b16 %v454, %v453
    %v499 = vpack.c.b16 %v456, %v455
    %v500 = vpack.c.b16 %v458, %v457
    %v501 = vpack.c.b16 %v460, %v459
    %v502 = vpack.c.b16 %v462, %v461
    %v503 = vpack.c.b16 %v464, %v463
    %v504 = vpack.c.b16 %v466, %v465
    %v505 = vpack.c.b16 %v468, %v467
    %v506 = vpack.c.b16 %v470, %v469
    %v507 = vpack.c.b16 %v472, %v471
    %v508 = vpack.c.b16 %v474, %v473
    %v509 = vpack.c.b16 %v476, %v475
    %v510 = vpack.c.b16 %v478, %v477
    %v511 = vpack.c.b16 %v480, %v479
    %v512 = vpack.c.b16 %v482, %v481
    %v513 = vpack.c.b16 %v484, %v483
    %v514 = vpack.c.b16 %v486, %v485
    %v515 = vpack.c.b16 %v488, %v487
    %v516 = vpack.c.b16 %v490, %v489
    %v517 = vpack.c.b16 %v492, %v491
    %v518 = vpack.c.b16 %v494, %v493
    %543 = vmatpush.bf16.msra.mxu0 %v502
    %544 = vmatpush.bf16.msra.mxu0 %v501
    %545 = vmatpush.bf16.msra.mxu0 %v500
    %546 = vmatpush.bf16.msra.mxu0 %v499
    %547 = vmatpush.bf16.msra.mxu0 %v498
    %548 = vmatpush.bf16.msra.mxu0 %v497
    %549 = vmatpush.bf16.msra.mxu0 %v496
    %550 = vmatpush.bf16.msra.mxu0 %v495
    %551 = vmatmul.bf16.gmra.mxu0 %v387
    %v552 = vpop.f32.mrf.mxu0
    %v553 = vadd.f32 0.0, %v552
    %v554 = vpop.f32.mrf.mxu0
    %v555 = vadd.f32 0.0, %v554
    %556 = vmatmul.bf16.gmra.mxu0 %v390
    %v557 = vpop.f32.mrf.mxu0
    %v558 = vadd.f32 0.0, %v557
    %v559 = vpop.f32.mrf.mxu0
    %v560 = vadd.f32 0.0, %v559
    %561 = vdwg.mxu0
    %562 = vmatpush.bf16.msra.mxu0 %v510
    %563 = vmatpush.bf16.msra.mxu0 %v509
    %564 = vmatpush.bf16.msra.mxu0 %v508
    %565 = vmatpush.bf16.msra.mxu0 %v507
    %566 = vmatpush.bf16.msra.mxu0 %v506
    %567 = vmatpush.bf16.msra.mxu0 %v505
    %568 = vmatpush.bf16.msra.mxu0 %v504
    %569 = vmatpush.bf16.msra.mxu0 %v503
    %570 = vmatmul.bf16.gmra.mxu0 %v388
    %v571 = vpop.f32.mrf.mxu0
    %v572 = vadd.f32 %v553, %v571
    %v573 = vpop.f32.mrf.mxu0
    %v574 = vadd.f32 %v555, %v573
    %575 = vmatmul.bf16.gmra.mxu0 %v391
    %v576 = vpop.f32.mrf.mxu0
    %v577 = vadd.f32 %v558, %v576
    %v578 = vpop.f32.mrf.mxu0
    %v579 = vadd.f32 %v560, %v578
    %580 = vdwg.mxu0
    %581 = vmatpush.bf16.msra.mxu0 %v518
    %582 = vmatpush.bf16.msra.mxu0 %v517
    %583 = vmatpush.bf16.msra.mxu0 %v516
    %584 = vmatpush.bf16.msra.mxu0 %v515
    %585 = vmatpush.bf16.msra.mxu0 %v514
    %586 = vmatpush.bf16.msra.mxu0 %v513
    %587 = vmatpush.bf16.msra.mxu0 %v512
    %588 = vmatpush.bf16.msra.mxu0 %v511
    %589 = vmatmul.bf16.gmra.mxu0 %v389
    %v590 = vpop.f32.mrf.mxu0
    %v591 = vadd.f32 %v572, %v590
    %v592 = vpop.f32.mrf.mxu0
    %v593 = vadd.f32 %v574, %v592
    %594 = vmatmul.bf16.gmra.mxu0 %v392
    %v595 = vpop.f32.mrf.mxu0
    %v596 = vadd.f32 %v577, %v595
    %v597 = vpop.f32.mrf.mxu0
    %v598 = vadd.f32 %v579, %v597
    %599 = vdwg.mxu0
    %v600 = vpack.c.bf16 %v315, %v315
    %v601 = vpack.c.bf16 %v317, %v317
    %v602 = vpack.c.bf16 %v591, %v591
    %v603 = vpack.c.bf16 %v593, %v593
    %v604 = vpack.c.bf16 %v596, %v596
    %v605 = vpack.c.bf16 %v598, %v598
    %v608 = vunpack.c.l.b16 %v602
    %v609 = vunpack.c.l.b16 %v603
    %v610 = vpack.c.b16 %v609, %v608
    %vm611 = vcmask 523264
    %v613 = vsel %vm611, %v600, 0
    %v616 = vsel %vm611, %v610, 0
    %618 = vmatpush.bf16.xpose.msra.mxu0 0
    %619 = vmatpush.bf16.xpose.msra.mxu0 0
    %620 = vmatpush.bf16.xpose.msra.mxu0 0
    %621 = vmatpush.bf16.xpose.msra.mxu0 0
    %622 = vmatpush.bf16.xpose.msra.mxu0 0
    %623 = vmatpush.bf16.xpose.msra.mxu0 0
    %624 = vmatpush.bf16.xpose.msra.mxu0 0
    %625 = vmatpush.bf16.xpose.msra.mxu0 %v616
    %626 = vmatmul.bf16.gmra.mxu0 %v613
    %v627 = vpop.f32.mrf.mxu0
    %v628 = vadd.f32 0.0, %v627
    %v629 = vpop.f32.mrf.mxu0
    %630 = vdwg.mxu0
    %vm631 = vcmask 130048
    %v632 = vsel %vm631, %v628, -inf
    %633 = vmax.xlane.f32.xlu0 %v632
    %v634 = vpop.xlane.xlu0 %633
    %v635 = vsub.f32 %v628, %v634
    %v636 = vmul.f32 %v635, 1.442695
    %v637 = vpow.pop %v636
    %v638 = vsel %vm631, %v637, 0.0
    %639 = vadd.xlane.f32.xlu0 %v638
    %v640 = vpop.xlane.xlu0 %639
    %v641 = vrcp.pop %v640
    %v642 = vmul.f32 %v637, %v641
    %v643 = vpack.c.bf16 %v642, %v642
    %644 = vrot.lane.b32.xlu0 %v610, 64
    %v645 = vpop.permute.xlu0 %644
    %v648 = vsel %vm631, %v643, 0
    %650 = vmatpush.bf16.msra.mxu0 0
    %651 = vmatpush.bf16.msra.mxu0 0
    %652 = vmatpush.bf16.msra.mxu0 0
    %653 = vmatpush.bf16.msra.mxu0 0
    %654 = vmatpush.bf16.msra.mxu0 0
    %655 = vmatpush.bf16.msra.mxu0 0
    %656 = vmatpush.bf16.msra.mxu0 0
    %657 = vmatpush.bf16.msra.mxu0 %v645
    %658 = vmatmul.bf16.gmra.mxu0 %v648
    %v659 = vpop.f32.mrf.mxu0
    %v660 = vadd.f32 0.0, %v659
    %v661 = vpop.f32.mrf.mxu0
    %662 = vdwg.mxu0
    %663 = vst.msk [vmem:[#allocation2] sm:$0xff] %vm611, %v660
    %v666 = vunpack.c.l.b16 %v604
    %v667 = vunpack.c.l.b16 %v605
    %v668 = vpack.c.b16 %v667, %v666
    %v670 = vsel %vm611, %v601, 0
    %v673 = vsel %vm611, %v668, 0
    %675 = vmatpush.bf16.xpose.msra.mxu0 0
    %676 = vmatpush.bf16.xpose.msra.mxu0 0
    %677 = vmatpush.bf16.xpose.msra.mxu0 0
    %678 = vmatpush.bf16.xpose.msra.mxu0 0
    %679 = vmatpush.bf16.xpose.msra.mxu0 0
    %680 = vmatpush.bf16.xpose.msra.mxu0 0
    %681 = vmatpush.bf16.xpose.msra.mxu0 0
    %682 = vmatpush.bf16.xpose.msra.mxu0 %v673
    %683 = vmatmul.bf16.gmra.mxu0 %v670
    %v684 = vpop.f32.mrf.mxu0
    %v685 = vadd.f32 0.0, %v684
    %v686 = vpop.f32.mrf.mxu0
    %687 = vdwg.mxu0
    %v688 = vsel %vm631, %v685, -inf
    %689 = vmax.xlane.f32.xlu0 %v688
    %v690 = vpop.xlane.xlu0 %689
    %v691 = vsub.f32 %v685, %v690
    %v692 = vmul.f32 %v691, 1.442695
    %v693 = vpow.pop %v692
    %v694 = vsel %vm631, %v693, 0.0
    %695 = vadd.xlane.f32.xlu0 %v694
    %v696 = vpop.xlane.xlu0 %695
    %v697 = vrcp.pop %v696
    %v698 = vmul.f32 %v693, %v697
    %v699 = vpack.c.bf16 %v698, %v698
    %700 = vrot.lane.b32.xlu0 %v668, 64
    %v701 = vpop.permute.xlu0 %700
    %v704 = vsel %vm631, %v699, 0
    %706 = vmatpush.bf16.msra.mxu0 0
    %707 = vmatpush.bf16.msra.mxu0 0
    %708 = vmatpush.bf16.msra.mxu0 0
    %709 = vmatpush.bf16.msra.mxu0 0
    %710 = vmatpush.bf16.msra.mxu0 0
    %711 = vmatpush.bf16.msra.mxu0 0
    %712 = vmatpush.bf16.msra.mxu0 0
    %713 = vmatpush.bf16.msra.mxu0 %v701
    %714 = vmatmul.bf16.gmra.mxu0 %v704
    %v715 = vpop.f32.mrf.mxu0
    %v716 = vadd.f32 0.0, %v715
    %v717 = vpop.f32.mrf.mxu0
    %718 = vdwg.mxu0
    %719 = vst.msk [vmem:[#allocation2 + $0x8] sm:$0xff] %vm611, %v716
    %v720 = vld [vmem:[#allocation2] sm:$0xff]
    %v721 = vld [vmem:[#allocation2 + $0x8] sm:$0xff]
    %v722 = vpack.c.bf16 %v721, %v720
    %v723 = vld [vmem:[%s4] sm:$0xff]
    %v724 = vld [vmem:[%s4 + $0x8] sm:$0xf]
    %v725 = vld [vmem:[%s4 + $0xc] sm:$0xff]
    %v726 = vld [vmem:[%s4 + $0x14] sm:$0xf]
    %v727 = vld [vmem:[%s4 + $0x18] sm:$0xff]
    %v728 = vld [vmem:[%s4 + $0x20] sm:$0xf]
    %v729 = vld [vmem:[%s4 + $0x24] sm:$0xff]
    %v730 = vld [vmem:[%s4 + $0x2c] sm:$0xf]
    %v731 = vld [vmem:[%s4 + $0x30] sm:$0xff]
    %v732 = vld [vmem:[%s4 + $0x38] sm:$0xf]
    %v733 = vld [vmem:[%s4 + $0x3c] sm:$0xff]
    %v734 = vld [vmem:[%s4 + $0x44] sm:$0xf]
    %v735 = vld [vmem:[%s4 + $0x48] sm:$0xff]
    %v736 = vld [vmem:[%s4 + $0x50] sm:$0xf]
    %v737 = vld [vmem:[%s4 + $0x54] sm:$0xff]
    %v738 = vld [vmem:[%s4 + $0x5c] sm:$0xf]
    %v739 = vld [vmem:[%s5] sm:$0x7]
    %v741 = vperm.slane %v739, 0
    %v742 = vperm.slane %v739, 1
    %v743 = vperm.slane %v739, 2
    %v763 = vunpack.c.l.b16 %v723
    %v764 = vunpack.c.h.b16 %v723
    %v765 = vunpack.c.l.b16 %v724
    %v766 = vunpack.c.l.b16 %v725
    %v767 = vunpack.c.h.b16 %v725
    %v768 = vunpack.c.l.b16 %v726
    %v769 = vunpack.c.l.b16 %v727
    %v770 = vunpack.c.h.b16 %v727
    %v771 = vunpack.c.l.b16 %v728
    %v772 = vunpack.c.l.b16 %v729
    %v773 = vunpack.c.h.b16 %v729
    %v774 = vunpack.c.l.b16 %v730
    %v775 = vunpack.c.l.b16 %v731
    %v776 = vunpack.c.h.b16 %v731
    %v777 = vunpack.c.l.b16 %v732
    %v778 = vunpack.c.l.b16 %v733
    %v779 = vunpack.c.h.b16 %v733
    %v780 = vunpack.c.l.b16 %v734
    %v781 = vunpack.c.l.b16 %v735
    %v782 = vunpack.c.h.b16 %v735
    %v783 = vunpack.c.l.b16 %v736
    %v784 = vunpack.c.l.b16 %v737
    %v785 = vunpack.c.h.b16 %v737
    %v786 = vunpack.c.l.b16 %v738
    %v787 = vpack.c.b16 %v766, %v763
    %v788 = vpack.c.b16 %v767, %v764
    %v789 = vpack.c.b16 %v768, %v765
    %v790 = vpack.c.b16 %v772, %v769
    %v791 = vpack.c.b16 %v773, %v770
    %v792 = vpack.c.b16 %v774, %v771
    %v793 = vpack.c.b16 %v778, %v775
    %v794 = vpack.c.b16 %v779, %v776
    %v795 = vpack.c.b16 %v780, %v777
    %v796 = vpack.c.b16 %v784, %v781
    %v797 = vpack.c.b16 %v785, %v782
    %v798 = vpack.c.b16 %v786, %v783
    %v812 = vsel %vm611, %v722, 0
    %814 = vmatpush.bf16.msra.mxu0 0
    %815 = vmatpush.bf16.msra.mxu0 0
    %816 = vmatpush.bf16.msra.mxu0 0
    %817 = vmatpush.bf16.msra.mxu0 0
    %818 = vmatpush.bf16.msra.mxu0 %v796
    %819 = vmatpush.bf16.msra.mxu0 %v793
    %820 = vmatpush.bf16.msra.mxu0 %v790
    %821 = vmatpush.bf16.msra.mxu0 %v787
    %822 = vmatmul.bf16.gmra.mxu0 %v812
    %v823 = vpop.f32.mrf.mxu0
    %v824 = vadd.f32 %v741, %v823
    %v825 = vpop.f32.mrf.mxu0
    %v826 = vadd.f32 %v741, %v825
    %827 = vdwg.mxu0
    %828 = vmatpush.bf16.msra.mxu0 0
    %829 = vmatpush.bf16.msra.mxu0 0
    %830 = vmatpush.bf16.msra.mxu0 0
    %831 = vmatpush.bf16.msra.mxu0 0
    %832 = vmatpush.bf16.msra.mxu0 %v797
    %833 = vmatpush.bf16.msra.mxu0 %v794
    %834 = vmatpush.bf16.msra.mxu0 %v791
    %835 = vmatpush.bf16.msra.mxu0 %v788
    %836 = vmatmul.bf16.gmra.mxu0 %v812
    %v837 = vpop.f32.mrf.mxu0
    %v838 = vadd.f32 %v742, %v837
    %v839 = vpop.f32.mrf.mxu0
    %v840 = vadd.f32 %v742, %v839
    %841 = vdwg.mxu0
    %842 = vmatpush.bf16.msra.mxu0 0
    %843 = vmatpush.bf16.msra.mxu0 0
    %844 = vmatpush.bf16.msra.mxu0 0
    %845 = vmatpush.bf16.msra.mxu0 0
    %846 = vmatpush.bf16.msra.mxu0 %v798
    %847 = vmatpush.bf16.msra.mxu0 %v795
    %848 = vmatpush.bf16.msra.mxu0 %v792
    %849 = vmatpush.bf16.msra.mxu0 %v789
    %850 = vmatmul.bf16.gmra.mxu0 %v812
    %v851 = vpop.f32.mrf.mxu0
    %v852 = vadd.f32 %v743, %v851
    %v853 = vpop.f32.mrf.mxu0
    %v854 = vadd.f32 %v743, %v853
    %855 = vdwg.mxu0
    %856 = vst [vmem:[#allocation8] sm:$0xff] %v824
    %857 = vst [vmem:[#allocation8 + $0x8] sm:$0xff] %v838
    %858 = vst [vmem:[#allocation8 + $0x10] sm:$0xff] %v852
    %859 = vst [vmem:[#allocation8 + $0x18] sm:$0xff] %v826
    %860 = vst [vmem:[#allocation8 + $0x20] sm:$0xff] %v840
    %861 = vst [vmem:[#allocation8 + $0x28] sm:$0xff] %v854
    // Predicated region
    $region34: #{tpu_custom_call.1} parent=1 // pred_check
      _
    $region35: #{tpu_custom_call.1} parent=1 // pred_check_branch
      %863 = sbr.rel (0) target = $region37
    $region36: #{tpu_custom_call.1} parent=1 // pred_region
      %865 = vsyncadd [#allocation5], 0
      %s866 = sshll.u32 [#allocation8], 4
      %s867 = int_to_ptr.vmem [resolvable:$true] %s866
      %s868 = sshll.u32 %s6, 4
      %s869 = int_to_ptr.hbm [resolvable:$true] %s868
      %874 = dma.vmem_to_hbm [thread:$0]  %s867, 768, %s869, [#allocation5], 384, 384, 24
    $region37: #{tpu_custom_call.1} parent=1 // pred_fallthru
      _
    // Predicated region
    $region38: #{tpu_custom_call.1} parent=1 // pred_check
      _
    $region39: #{tpu_custom_call.1} parent=1 // pred_check_branch
      %876 = sbr.rel (0) target = $region41
    $region40: #{tpu_custom_call.1} parent=1 // pred_region
      %878 = dma.done [#allocation5], 768
    $region41: #{tpu_custom_call.1} parent=1 // pred_fallthru
      _
    %879 = vsyncpa [#allocation4], 1
    %880 = vsyncpa [#allocation7], 1
    %881 = vsyncpa [#allocation5], 1

</llo_original>
